<compile_context>
chip_gen: v7x
topology: tpu7x:2x2x1
jax: 0.10.0
libtpu: 0.0.40
codegen_flags: <defaults>
</compile_context>

<pallas_src>
import functools

import jax
import jax.numpy as jnp
import numpy as np
from jax.experimental import pallas as pl
from jax.experimental.pallas import tpu as pltpu


def _shuffle_kernel(x_ref, out0_ref, out1_ref, *, hw: int):
    # x_ref:    (1, TC, 2*hw)  -- TC channel-pairs; parity folded into lanes
    # out*_ref: (1, TC, hw)
    out0_ref[...] = x_ref[:, :, :hw]   # even original channels (2k)
    out1_ref[...] = x_ref[:, :, hw:]   # odd  original channels (2k + 1)


def _pick_channel_tile(half: int, hw: int, itemsize: int,
                       target_bytes: int = 1 << 20) -> int:
    """Channel-pair tile: a multiple of 8 that divides `half` (or `half`
    itself), keeping the input block (TC * 2*hw * itemsize) near ~1 MiB so
    double-buffered in + two double-buffered outs stay well under scoped VMEM
    on every TPU generation (v5e 16 MiB default, v7x 32 MiB)."""
    if half % 8 != 0:
        # Block dim must equal the full dim to satisfy the (8, 128) rule.
        return half
    best = 8
    for cand in range(8, half + 1, 8):
        if half % cand == 0 and cand * 2 * hw * itemsize <= target_bytes:
            best = cand
    return best


def shuffle_channels(x, groups: int = 2):
    """Pallas implementation of ShuffleChannels.forward (groups must be 2)."""
    assert groups == 2
    B, C, H, W = x.shape
    assert C % 4 == 0  # mirrors the torch module's assert
    hw = H * W
    half = C // 2

    # Pure view reshape (glue):  x[b, 2k + p, h, w] == xr[b, k, p*hw + h*W + w]
    # i.e. the channel-parity axis is folded into the last (lane) dimension.
    xr = x.reshape(B, half, 2 * hw)

    tc = _pick_channel_tile(half, hw, x.dtype.itemsize)
    n_c = half // tc

    kernel = functools.partial(_shuffle_kernel, hw=hw)

    out0, out1 = pl.pallas_call(
        kernel,
        out_shape=(
            jax.ShapeDtypeStruct((B, half, hw), x.dtype),
            jax.ShapeDtypeStruct((B, half, hw), x.dtype),
        ),
        grid=(B, n_c),
        in_specs=[
            pl.BlockSpec((1, tc, 2 * hw), lambda b, c: (b, c, 0)),
        ],
        out_specs=(
            pl.BlockSpec((1, tc, hw), lambda b, c: (b, c, 0)),
            pl.BlockSpec((1, tc, hw), lambda b, c: (b, c, 0)),
        ),
        compiler_params=pltpu.CompilerParams(
            dimension_semantics=("parallel", "parallel"),
        ),
    )(xr)

    return out0.reshape(B, half, H, W), out1.reshape(B, half, H, W)


def _torch_reference(xn: np.ndarray, groups: int = 2):
    """Numpy mirror of the PyTorch forward (reshape/permute semantics)."""
    B, C, H, W = xn.shape
    r = xn.reshape(B * C // groups, groups, H * W)
    r = r.transpose(1, 0, 2)
    r = r.reshape(groups, B, C // groups, H, W)
    return r[0], r[1]


def _run_case(key, shape):
    B, C, H, W = shape
    x = jax.random.normal(key, (B, C, H, W), dtype=jnp.float32)
    y0, y1 = shuffle_channels(x, groups=2)
    y0 = jax.block_until_ready(y0)
    y1 = jax.block_until_ready(y1)

    r0, r1 = _torch_reference(np.asarray(x))
    np.testing.assert_allclose(np.asarray(y0), r0, rtol=0, atol=0)
    np.testing.assert_allclose(np.asarray(y1), r1, rtol=0, atol=0)
    assert y0.shape == (B, C // 2, H, W) and y1.shape == (B, C // 2, H, W)


if __name__ == "__main__":
    key = jax.random.PRNGKey(0)
    k0, k1, k2 = jax.random.split(key, 3)

    # Primary small case from the spec.
    _run_case(k0, (2, 4, 16, 16))
    # Channel-tiled path (half = 8, lane dim a multiple of 128).
    _run_case(k1, (1, 16, 8, 16))
    # Non-128-multiple spatial size (hw = 196) -> block equals full dim.
    _run_case(k2, (2, 8, 14, 14))

    print("KERNEL_OK")
</pallas_src>

<mosaic_0001>
module attributes {stable_mosaic.version = 11 : i64} {
  func.func @_shuffle_kernel(%arg0: i32, %arg1: i32, %arg2: memref<1x2x512xf32, #tpu.memory_space<vmem>>, %arg3: memref<1x2x256xf32, #tpu.memory_space<vmem>>, %arg4: memref<1x2x256xf32, #tpu.memory_space<vmem>>) attributes {dimension_semantics = [#tpu.dimension_semantics<parallel>, #tpu.dimension_semantics<parallel>], iteration_bounds = array<i64: 2, 1>, scalar_prefetch = 0 : i64, scratch_operands = 0 : i64, tpu.core_type = #tpu.core_type<tc>, window_params = [{transform_indices = @transform_0, window_bounds = array<i64: 1, 2, 512>}, {transform_indices = @transform_1, window_bounds = array<i64: 1, 2, 256>}, {transform_indices = @transform_2, window_bounds = array<i64: 1, 2, 256>}]} {
    %c0 = arith.constant 0 : index
    %c0_0 = arith.constant 0 : index
    %c0_1 = arith.constant 0 : index
    %0 = vector.load %arg2[%c0, %c0_0, %c0_1] : memref<1x2x512xf32, #tpu.memory_space<vmem>>, vector<1x2x256xf32>
    %c0_2 = arith.constant 0 : index
    %c0_3 = arith.constant 0 : index
    %c0_4 = arith.constant 0 : index
    %1 = vector.load %arg3[%c0_2, %c0_3, %c0_4] : memref<1x2x256xf32, #tpu.memory_space<vmem>>, vector<1x2x256xf32>
    tpu.vector_store %arg3[%c0_2, %c0_3, %c0_4], %0 {strides = array<i32>} : memref<1x2x256xf32, #tpu.memory_space<vmem>>, vector<1x2x256xf32>,
    %c0_5 = arith.constant 0 : index
    %c0_6 = arith.constant 0 : index
    %c256 = arith.constant 256 : index
    %2 = vector.load %arg2[%c0_5, %c0_6, %c256] : memref<1x2x512xf32, #tpu.memory_space<vmem>>, vector<1x2x256xf32>
    %c0_7 = arith.constant 0 : index
    %c0_8 = arith.constant 0 : index
    %c0_9 = arith.constant 0 : index
    %3 = vector.load %arg4[%c0_7, %c0_8, %c0_9] : memref<1x2x256xf32, #tpu.memory_space<vmem>>, vector<1x2x256xf32>
    tpu.vector_store %arg4[%c0_7, %c0_8, %c0_9], %2 {strides = array<i32>} : memref<1x2x256xf32, #tpu.memory_space<vmem>>, vector<1x2x256xf32>,
    return
  }
  func.func @transform_0(%arg0: i32, %arg1: i32) -> (i32, i32, i32) {
    %c0_i32 = arith.constant 0 : i32
    %c0_i32_0 = arith.constant 0 : i32
    return %arg0, %arg1, %c0_i32 : i32, i32, i32
  }
  func.func @transform_1(%arg0: i32, %arg1: i32) -> (i32, i32, i32) {
    %c0_i32 = arith.constant 0 : i32
    %c0_i32_0 = arith.constant 0 : i32
    return %arg0, %arg1, %c0_i32 : i32, i32, i32
  }
  func.func @transform_2(%arg0: i32, %arg1: i32) -> (i32, i32, i32) {
    %c0_i32 = arith.constant 0 : i32
    %c0_i32_0 = arith.constant 0 : i32
    return %arg0, %arg1, %c0_i32 : i32, i32, i32
  }
}

</mosaic_0001>

<llo_original>
// kernel: tpu_custom_call.1
$region0: #{tpu_custom_call.1}
  #allocation0 [shape = 'u32[]', space=smem, size = 0x4, offset = 0x4, fixed_abs, tag = 'smem constant byte address 0x4 - core index']
  #allocation1 [shape = 'u32[144,128]{1,0:T(1,128)}', space=vmem, size = 0x12000, scoped, tag = 'internal scratch']
  %s0 = inlined_call_operand.hbm [shape: f32[2,2,512], index: 0, kind: input, shape index: {}]
  %s1 = inlined_call_operand.hbm [shape: f32[2,2,256], index: 1, kind: output, shape index: {0}]
  %s2 = inlined_call_operand.hbm [shape: f32[2,2,256], index: 2, kind: output, shape index: {1}]
  %3 = xla_tuple %s1, %s2
  %s4 = sld [smem:[#allocation0]]
  $region49: #{tpu_custom_call.1} parent=0
    _
  %s6 = ssub.s32 1, %s4
  %s7 = scalar_select 0, %s6, %s4
  $region1: #{tpu_custom_call.1} parent=0
    #allocation2 [shape = 'u8[8192]{0}', space=vmem, size = 0x2000, scoped, tag = 'input window, operand 0']
    #allocation3 [shape = 's32[2]{0}', space=sflag, size = 0x8, scoped, tag = 'scoped memory for tpu_custom_call.1']
    #allocation4 [shape = 's32[2]{0}', space=sflag, size = 0x8, scoped, tag = 'scoped memory for tpu_custom_call.1']
    #allocation5 [shape = 'u8[4096]{0}', space=vmem, size = 0x1000, scoped, tag = 'output window, operand 0']
    #allocation6 [shape = 'u8[4096]{0}', space=vmem, size = 0x1000, scoped, tag = 'output window, operand 1']
    #allocation7 [shape = 's32[2]{0}', space=sflag, size = 0x8, scoped, tag = 'scoped memory for tpu_custom_call.1']
    %8 = vsyncpa [#allocation3], 0
    %s9 = scalar_lea.sflag [#allocation3], 1
    %10 = vsyncpa %s9, 0
    %11 = vsyncpa [#allocation4], 0
    %s12 = scalar_lea.sflag [#allocation4], 1
    %13 = vsyncpa %s12, 0
    %14 = vsyncpa [#allocation7], 0
    %s15 = scalar_lea.sflag [#allocation7], 1
    %16 = vsyncpa %s15, 0
    loop: start=0, step=1, limit=4
    $region2: #{tpu_custom_call.1} parent=1 // loop_pre_header
      _
    $region3: #{tpu_custom_call.1} parent=1 // loop_header
      %s18 = sphi 0, %s22
      %p19 = scmp.ge.s32.totalorder %s18, 4
      %s25 = sphi 0, %s37
      %s26 = sphi 0, %s33
      %s27 = sphi 0, %s25
      %s28 = sphi 0, %s26
      %s29 = sphi 0, %s27
      %s30 = sphi 0, %s28
      %s42 = sphi 0, %s44
      %s45 = sphi 0, %s42
      %s46 = sphi 0, %s45
      %s62 = sphi 0, %s46
      %s70 = sphi 0, %s72
      %s73 = sphi 0, %s70
      %s74 = sphi 0, %s73
      %s90 = sphi 0, %s74
      %s98 = sphi 0, %s100
      %s101 = sphi 0, %s98
      %s102 = sphi 0, %s101
      %s118 = sphi 0, %s102
    $region4: #{tpu_custom_call.1} parent=1 // loop_header_branch
      %21 = sbr.rel (%p19) target = $region8
    $region5: #{tpu_custom_call.1} parent=1 // loop_body
      %s23 = ssub.s32 %s18, 1
      %s24 = ssub.s32 %s18, 2
      %s31 = sadd.s32 1, %s26
      %p32 = scmp.ge.s32.totalorder %s31, 1
      %s33 = scalar_select %p32, 0, %s31
      %s34 = sadd.s32 1, %s25
      %s35 = scalar_select %p32, %s34, %s25
      %p36 = scmp.ge.s32.totalorder %s35, 2
      %s37 = scalar_select %p36, 0, %s35
      %s38 = ssub.s32 %s25, %s37
      %s39 = ssub.s32 %s26, %s33
      %s40 = sor.u32 %s38, %s39
      %p41 = scmp.eq.s32.totalorder %s40, 0
      %s43 = sadd.s32 %s42, 1
      %s44 = scalar_select %p41, %s42, %s43
      %p47 = pneg %p41
      %p48 = scmp.eq.s32.totalorder %s18, 1
      %p49 = por %p47, %p48
      %p50 = scmp.ne.s32.totalorder %s42, %s45
      %p51 = scmp.eq.s32.totalorder %s18, 0
      %p52 = por %p50, %p51
      %p53 = scmp.ne.s32.totalorder %s42, %s45
      %p54 = scmp.eq.s32.totalorder %s23, 1
      %p55 = por %p53, %p54
      %p56 = scmp.ne.s32.totalorder %s45, %s46
      %p57 = scmp.eq.s32.totalorder %s23, 0
      %p58 = por %p56, %p57
      %p59 = scmp.ne.s32.totalorder %s45, %s46
      %p60 = scmp.eq.s32.totalorder %s24, 1
      %p61 = por %p59, %p60
      %p63 = scmp.ne.s32.totalorder %s46, %s62
      %p64 = scmp.eq.s32.totalorder %s24, 0
      %p65 = por %p63, %p64
      %s66 = ssub.s32 %s25, %s37
      %s67 = ssub.s32 %s26, %s33
      %s68 = sor.u32 %s66, %s67
      %p69 = scmp.eq.s32.totalorder %s68, 0
      %s71 = sadd.s32 %s70, 1
      %s72 = scalar_select %p69, %s70, %s71
      %p75 = pneg %p69
      %p76 = scmp.eq.s32.totalorder %s18, 1
      %p77 = por %p75, %p76
      %p78 = scmp.ne.s32.totalorder %s70, %s73
      %p79 = scmp.eq.s32.totalorder %s18, 0
      %p80 = por %p78, %p79
      %p81 = scmp.ne.s32.totalorder %s70, %s73
      %p82 = scmp.eq.s32.totalorder %s23, 1
      %p83 = por %p81, %p82
      %p84 = scmp.ne.s32.totalorder %s73, %s74
      %p85 = scmp.eq.s32.totalorder %s23, 0
      %p86 = por %p84, %p85
      %p87 = scmp.ne.s32.totalorder %s73, %s74
      %p88 = scmp.eq.s32.totalorder %s24, 1
      %p89 = por %p87, %p88
      %p91 = scmp.ne.s32.totalorder %s74, %s90
      %p92 = scmp.eq.s32.totalorder %s24, 0
      %p93 = por %p91, %p92
      %s94 = ssub.s32 %s25, %s37
      %s95 = ssub.s32 %s26, %s33
      %s96 = sor.u32 %s94, %s95
      %p97 = scmp.eq.s32.totalorder %s96, 0
      %s99 = sadd.s32 %s98, 1
      %s100 = scalar_select %p97, %s98, %s99
      %p103 = pneg %p97
      %p104 = scmp.eq.s32.totalorder %s18, 1
      %p105 = por %p103, %p104
      %p106 = scmp.ne.s32.totalorder %s98, %s101
      %p107 = scmp.eq.s32.totalorder %s18, 0
      %p108 = por %p106, %p107
      %p109 = scmp.ne.s32.totalorder %s98, %s101
      %p110 = scmp.eq.s32.totalorder %s23, 1
      %p111 = por %p109, %p110
      %p112 = scmp.ne.s32.totalorder %s101, %s102
      %p113 = scmp.eq.s32.totalorder %s23, 0
      %p114 = por %p112, %p113
      %p115 = scmp.ne.s32.totalorder %s101, %s102
      %p116 = scmp.eq.s32.totalorder %s24, 1
      %p117 = por %p115, %p116
      %p119 = scmp.ne.s32.totalorder %s102, %s118
      %p120 = scmp.eq.s32.totalorder %s24, 0
      %p121 = por %p119, %p120
      %p122 = scmp.le.s32.totalorder 1, %s18
      %p123 = scmp.lt.s32.totalorder %s18, 3
      %p124 = pnand %p122, %p123
      %p125 = pneg %p124
      // Predicated region
      $region9: #{tpu_custom_call.1} parent=5 // pred_check
        _
      $region10: #{tpu_custom_call.1} parent=5 // pred_check_branch
        %127 = sbr.rel (%p124) target = $region12
      $region11: #{tpu_custom_call.1} parent=5 // pred_region
        %s128 = ssub.s32 %s18, 1
      $region12: #{tpu_custom_call.1} parent=5 // pred_fallthru
        _
      %p129 = scmp.lt.s32.totalorder %s18, 2
      // Predicated region
      $region13: #{tpu_custom_call.1} parent=5 // pred_check
        %p130 = pneg %p129
      $region14: #{tpu_custom_call.1} parent=5 // pred_check_branch
        %132 = sbr.rel (%p130) target = $region16
      $region15: #{tpu_custom_call.1} parent=5 // pred_region
        // Predicated region
        $region17: #{tpu_custom_call.1} parent=15 // pred_check
          %p133 = pneg %p52
        $region18: #{tpu_custom_call.1} parent=15 // pred_check_branch
          %135 = sbr.rel (%p133) target = $region20
        $region19: #{tpu_custom_call.1} parent=15 // pred_region
          %s136 = sand.u32 %s42, 1
          %s137 = scalar_lea.sflag [#allocation3], %s136
          %s138 = sand.u32 %s42, 1
          %s139 = smul.addr %s138, 8
          %s140 = scalar_lea.vmem [#allocation2], %s139
          %s142 = ssub.s32 128, 128
          %143 = vsyncadd %s137, %s142
          %s144 = smul.addr %s26, 4
          %s145 = smul.addr %s25, 4
          %s146 = sadd.s32 %s144, %s145
          %s147 = smul.addr %s146, 32
          %s148 = scalar_lea.hbm %s0, %s147
          %s150 = sshll.u32 %s140, 4
          %s151 = int_to_ptr.vmem [resolvable:$true] %s150
          %153 = dma.hbm_to_vmem [thread:$0]  %s148, 128, %s151, %s137
        $region20: #{tpu_custom_call.1} parent=15 // pred_fallthru
          _
      $region16: #{tpu_custom_call.1} parent=5 // pred_fallthru
        _
      %p154 = scmp.le.s32.totalorder 1, %s18
      %p155 = scmp.lt.s32.totalorder %s18, 3
      %p156 = pnand %p154, %p155
      %p157 = pneg %p156
      // Predicated region
      $region21: #{tpu_custom_call.1} parent=5 // pred_check
        _
      $region22: #{tpu_custom_call.1} parent=5 // pred_check_branch
        %159 = sbr.rel (%p156) target = $region24
      $region23: #{tpu_custom_call.1} parent=5 // pred_region
        %s160 = ssub.s32 %s18, 1
        %s161 = sand.u32 %s45, 1
        %s162 = scalar_lea.sflag [#allocation3], %s161
        %s163 = sand.u32 %s45, 1
        %s164 = smul.addr %s163, 8
        %s165 = scalar_lea.vmem [#allocation2], %s164
        // Predicated region
        $region25: #{tpu_custom_call.1} parent=23 // pred_check
          %p166 = pneg %p58
        $region26: #{tpu_custom_call.1} parent=23 // pred_check_branch
          %168 = sbr.rel (%p166) target = $region28
        $region27: #{tpu_custom_call.1} parent=23 // pred_region
          %169 = dma.done %s162, 128
        $region28: #{tpu_custom_call.1} parent=23 // pred_fallthru
          _
        %s170 = sand.u32 %s45, 1
        %s171 = scalar_lea.sflag [#allocation3], %s170
        %s172 = sand.u32 %s45, 1
        %s173 = smul.addr %s172, 8
        %s174 = scalar_lea.vmem [#allocation2], %s173
        %p175 = pneg %p58
        %p176 = pneg %p55
        %p177 = pneg %p86
        %p178 = pneg %p83
        %s179 = sand.u32 %s73, 1
        %s180 = scalar_lea.sflag [#allocation4], %s179
        %s181 = sand.u32 %s73, 1
        %s182 = smul.addr %s181, 4
        %s183 = scalar_lea.vmem [#allocation5], %s182
        %p184 = pneg %p114
        %p185 = pneg %p111
        %s186 = sand.u32 %s101, 1
        %s187 = scalar_lea.sflag [#allocation7], %s186
        %s188 = sand.u32 %s101, 1
        %s189 = smul.addr %s188, 4
        %s190 = scalar_lea.vmem [#allocation6], %s189
        %v191 = vld [vmem:[%s165] sm:$0xf]
        %192 = vst [vmem:[%s183] sm:$0xf] %v191
        %v193 = vld [vmem:[%s165 + $0x4] sm:$0xf]
        %194 = vst [vmem:[%s190] sm:$0xf] %v193
        %s195 = sand.u32 %s73, 1
        %s196 = scalar_lea.sflag [#allocation4], %s195
        %s197 = sand.u32 %s73, 1
        %s198 = smul.addr %s197, 4
        %s199 = scalar_lea.vmem [#allocation5], %s198
        %s200 = sand.u32 %s101, 1
        %s201 = scalar_lea.sflag [#allocation7], %s200
        %s202 = sand.u32 %s101, 1
        %s203 = smul.addr %s202, 4
        %s204 = scalar_lea.vmem [#allocation6], %s203
        // Predicated region
        $region29: #{tpu_custom_call.1} parent=23 // pred_check
          %p205 = pneg %p83
        $region30: #{tpu_custom_call.1} parent=23 // pred_check_branch
          %207 = sbr.rel (%p205) target = $region32
        $region31: #{tpu_custom_call.1} parent=23 // pred_region
          %s209 = ssub.s32 64, 64
          %210 = vsyncadd %s196, %s209
          %s211 = smul.addr %s28, 2
          %s212 = smul.addr %s27, 2
          %s213 = sadd.s32 %s211, %s212
          %s214 = smul.addr %s213, 32
          %s215 = scalar_lea.hbm %s1, %s214
          %s217 = sshll.u32 %s199, 4
          %s218 = int_to_ptr.vmem [resolvable:$true] %s217
          %220 = dma.vmem_to_hbm [thread:$0]  %s218, 64, %s215, %s196
        $region32: #{tpu_custom_call.1} parent=23 // pred_fallthru
          _
        // Predicated region
        $region33: #{tpu_custom_call.1} parent=23 // pred_check
          %p221 = pneg %p111
        $region34: #{tpu_custom_call.1} parent=23 // pred_check_branch
          %223 = sbr.rel (%p221) target = $region36
        $region35: #{tpu_custom_call.1} parent=23 // pred_region
          %s225 = ssub.s32 64, 64
          %226 = vsyncadd %s201, %s225
          %s227 = smul.addr %s28, 2
          %s228 = smul.addr %s27, 2
          %s229 = sadd.s32 %s227, %s228
          %s230 = smul.addr %s229, 32
          %s231 = scalar_lea.hbm %s2, %s230
          %s233 = sshll.u32 %s204, 4
          %s234 = int_to_ptr.vmem [resolvable:$true] %s233
          %236 = dma.vmem_to_hbm [thread:$0]  %s234, 64, %s231, %s201
        $region36: #{tpu_custom_call.1} parent=23 // pred_fallthru
          _
      $region24: #{tpu_custom_call.1} parent=5 // pred_fallthru
        _
      %p237 = scmp.le.s32.totalorder 2, %s18
      // Predicated region
      $region37: #{tpu_custom_call.1} parent=5 // pred_check
        %p238 = pneg %p237
      $region38: #{tpu_custom_call.1} parent=5 // pred_check_branch
        %240 = sbr.rel (%p238) target = $region40
      $region39: #{tpu_custom_call.1} parent=5 // pred_region
        %s241 = ssub.s32 %s18, 2
        // Predicated region
        $region41: #{tpu_custom_call.1} parent=39 // pred_check
          %p242 = pneg %p89
        $region42: #{tpu_custom_call.1} parent=39 // pred_check_branch
          %244 = sbr.rel (%p242) target = $region44
        $region43: #{tpu_custom_call.1} parent=39 // pred_region
          %s245 = sand.u32 %s74, 1
          %s246 = scalar_lea.sflag [#allocation4], %s245
          %s247 = sand.u32 %s74, 1
          %s248 = smul.addr %s247, 4
          %s249 = scalar_lea.vmem [#allocation5], %s248
          %250 = dma.done %s246, 64
        $region44: #{tpu_custom_call.1} parent=39 // pred_fallthru
          _
        // Predicated region
        $region45: #{tpu_custom_call.1} parent=39 // pred_check
          %p251 = pneg %p117
        $region46: #{tpu_custom_call.1} parent=39 // pred_check_branch
          %253 = sbr.rel (%p251) target = $region48
        $region47: #{tpu_custom_call.1} parent=39 // pred_region
          %s254 = sand.u32 %s102, 1
          %s255 = scalar_lea.sflag [#allocation7], %s254
          %s256 = sand.u32 %s102, 1
          %s257 = smul.addr %s256, 4
          %s258 = scalar_lea.vmem [#allocation6], %s257
          %259 = dma.done %s255, 64
        $region48: #{tpu_custom_call.1} parent=39 // pred_fallthru
          _
      $region40: #{tpu_custom_call.1} parent=5 // pred_fallthru
        _
    $region6: #{tpu_custom_call.1} parent=1 // loop_footer
      %s22 = sadd.s32 1, %s18
    $region7: #{tpu_custom_call.1} parent=1 // loop_footer_branch
      %17 = sbr.rel target = $region3
    $region8: #{tpu_custom_call.1} parent=1 // loop_exit
      _
    %260 = vsyncpa [#allocation3], 1
    %s261 = scalar_lea.sflag [#allocation3], 1
    %262 = vsyncpa %s261, 1
    %263 = vsyncpa [#allocation4], 1
    %s264 = scalar_lea.sflag [#allocation4], 1
    %265 = vsyncpa %s264, 1
    %266 = vsyncpa [#allocation7], 1
    %s267 = scalar_lea.sflag [#allocation7], 1
    %268 = vsyncpa %s267, 1

</llo_original>
